<compile_context>
chip_gen: v6e
topology: v6e:2x2x1
jax: 0.10.0
libtpu: 0.0.40
codegen_flags: <defaults>
</compile_context>

<pallas_src>
import functools
import math

import jax
import jax.numpy as jnp
from jax import lax
from jax.experimental import pallas as pl
from jax.experimental.pallas import tpu as pltpu


# 48 MiB scoped VMEM: leaves headroom on v7x (64 MiB/TC) and is comfortably legal on v5e/v6e.
_VMEM_LIMIT = 48 * 1024 * 1024


# ------------------------------------------------------------------ helpers --

def _round_up(x, m):
    return ((x + m - 1) // m) * m


def _is_bf16(dt):
    return jnp.dtype(dt) == jnp.dtype(jnp.bfloat16)


def _pad2d(a, rows, cols):
    r, c = a.shape
    if r == rows and c == cols:
        return a
    return jnp.pad(a, ((0, rows - r), (0, cols - c)))


def _seq_tile(dim, pref, align):
    """Largest multiple of `align` <= pref that divides `dim`; falls back to the full dim."""
    if dim <= pref:
        return dim
    t = (pref // align) * align
    while t >= align:
        if dim % t == 0:
            return t
        t -= align
    return dim  # TODO(synk): ragged seq lengths would need masked flash tiles.


# ------------------------------------------------------------------ kernels --

def _linear_kernel(x_ref, w_ref, b_ref, o_ref, acc_ref, *, mxu_dtype):
    # x_ref: (tm, tk)  w_ref: (tn, tk) (torch Linear layout (out,in))  b_ref: (1, tn)
    @pl.when(pl.program_id(2) == 0)
    def _():
        acc_ref[...] = jnp.zeros_like(acc_ref)

    # x @ w.T without materializing a transpose: contract the last axes of both operands.
    acc_ref[...] += lax.dot_general(
        x_ref[...].astype(mxu_dtype), w_ref[...].astype(mxu_dtype),
        dimension_numbers=(((1,), (1,)), ((), ())),
        preferred_element_type=jnp.float32)

    @pl.when(pl.program_id(2) == pl.num_programs(2) - 1)
    def _():
        o_ref[...] = (acc_ref[...] + b_ref[...].astype(jnp.float32)).astype(o_ref.dtype)


def _qkv_linear_kernel(x_ref, wq_ref, wk_ref, wv_ref, bq_ref, bk_ref, bv_ref,
                       q_ref, k_ref, v_ref, accq, acck, accv, *, mxu_dtype):
    # Fused Q/K/V projections: one x tile read per grid step feeds three matmuls.
    @pl.when(pl.program_id(2) == 0)
    def _():
        accq[...] = jnp.zeros_like(accq)
        acck[...] = jnp.zeros_like(acck)
        accv[...] = jnp.zeros_like(accv)

    x = x_ref[...].astype(mxu_dtype)
    dn = (((1,), (1,)), ((), ()))
    accq[...] += lax.dot_general(x, wq_ref[...].astype(mxu_dtype), dn,
                                 preferred_element_type=jnp.float32)
    acck[...] += lax.dot_general(x, wk_ref[...].astype(mxu_dtype), dn,
                                 preferred_element_type=jnp.float32)
    accv[...] += lax.dot_general(x, wv_ref[...].astype(mxu_dtype), dn,
                                 preferred_element_type=jnp.float32)

    @pl.when(pl.program_id(2) == pl.num_programs(2) - 1)
    def _():
        q_ref[...] = (accq[...] + bq_ref[...].astype(jnp.float32)).astype(q_ref.dtype)
        k_ref[...] = (acck[...] + bk_ref[...].astype(jnp.float32)).astype(k_ref.dtype)
        v_ref[...] = (accv[...] + bv_ref[...].astype(jnp.float32)).astype(v_ref.dtype)


def _flash_mha_kernel(q_ref, k_ref, v_ref, o_ref, m_ref, l_ref, acc_ref,
                      *, heads, head_dim, scale, mxu_dtype):
    # q_ref/o_ref: (1, tq, E); k_ref/v_ref: (1, tkv, E); head split/combine fused via column
    # slices.  m_ref/l_ref: (heads, tq, 1) f32; acc_ref: (tq, E) f32 (head h in cols h*Dh:(h+1)*Dh).
    kv = pl.program_id(2)

    @pl.when(kv == 0)
    def _():
        m_ref[...] = jnp.full_like(m_ref, -jnp.inf)
        l_ref[...] = jnp.zeros_like(l_ref)
        acc_ref[...] = jnp.zeros_like(acc_ref)

    for h in range(heads):                                  # static unroll over heads
        lo = h * head_dim
        hi = lo + head_dim
        # fold 1/sqrt(Dh) into q (tq*Dh muls instead of tq*tkv), then cast for the MXU
        q = (q_ref[0, :, lo:hi].astype(jnp.float32) * scale).astype(mxu_dtype)
        k = k_ref[0, :, lo:hi].astype(mxu_dtype)
        v = v_ref[0, :, lo:hi].astype(mxu_dtype)

        # scores = q @ k^T without an in-kernel transpose (contract last axes), f32 accumulate
        s = lax.dot_general(q, k,
                            dimension_numbers=(((1,), (1,)), ((), ())),
                            preferred_element_type=jnp.float32)      # (tq, tkv)

        m_prev = m_ref[h]                                             # (tq, 1)
        m_new = jnp.maximum(m_prev, jnp.max(s, axis=-1, keepdims=True))
        alpha = jnp.exp(m_prev - m_new)
        p = jnp.exp(s - m_new)                                        # f32 softmax numerator
        l_ref[h] = alpha * l_ref[h] + jnp.sum(p, axis=-1, keepdims=True)
        acc_ref[:, lo:hi] = alpha * acc_ref[:, lo:hi] + jnp.dot(
            p.astype(mxu_dtype), v, preferred_element_type=jnp.float32)
        m_ref[h] = m_new

    @pl.when(kv == pl.num_programs(2) - 1)
    def _():
        for h in range(heads):
            lo = h * head_dim
            hi = lo + head_dim
            inv = 1.0 / l_ref[h]                    # exact reciprocal (see review concern)
            o_ref[0, :, lo:hi] = (acc_ref[:, lo:hi] * inv).astype(o_ref.dtype)


# ----------------------------------------------------------------- wrappers --

def pallas_linear(x, w, b, *, tm=512, tn=512, tk=1024, mxu_dtype=None):
    """y = x @ w.T + b.   x: (..., E_in), w: (E_out, E_in), b: (E_out,)."""
    if mxu_dtype is None:
        mxu_dtype = x.dtype
    *lead, K = x.shape
    M = math.prod(lead) if lead else 1
    N = w.shape[0]

    sub = 16 if (_is_bf16(x.dtype) or _is_bf16(mxu_dtype)) else 8
    tm = min(tm, _round_up(M, sub))
    tn = min(tn, _round_up(N, 128))
    tk = min(tk, _round_up(K, 128))
    Mp, Np, Kp = _round_up(M, tm), _round_up(N, tn), _round_up(K, tk)

    # Zero-padding is exact for x @ W^T + b; the result is sliced back below.
    x2 = _pad2d(x.reshape(M, K), Mp, Kp)
    w2 = _pad2d(w, Np, Kp)
    b2 = _pad2d(b.reshape(1, N), 1, Np)

    kernel = functools.partial(_linear_kernel, mxu_dtype=mxu_dtype)
    out = pl.pallas_call(
        kernel,
        out_shape=jax.ShapeDtypeStruct((Mp, Np), x.dtype),
        grid_spec=pltpu.PrefetchScalarGridSpec(
            num_scalar_prefetch=0,
            grid=(Mp // tm, Np // tn, Kp // tk),
            in_specs=[
                pl.BlockSpec((tm, tk), lambda i, j, k: (i, k)),
                pl.BlockSpec((tn, tk), lambda i, j, k: (j, k)),
                pl.BlockSpec((1, tn), lambda i, j, k: (0, j)),
            ],
            out_specs=pl.BlockSpec((tm, tn), lambda i, j, k: (i, j)),
            scratch_shapes=[pltpu.VMEM((tm, tn), jnp.float32)],
        ),
        compiler_params=pltpu.CompilerParams(
            dimension_semantics=("parallel", "parallel", "arbitrary"),
            vmem_limit_bytes=_VMEM_LIMIT,
        ),
    )(x2, w2, b2)
    if Mp != M or Np != N:
        out = out[:M, :N]
    return out.reshape(*lead, N)


def pallas_qkv_linear(x, wq, bq, wk, bk, wv, bv, *, tm=256, tn=512, tk=512, mxu_dtype=None):
    """Fused q/k/v = x @ W{q,k,v}.T + b{q,k,v}: single kernel, x read from HBM once."""
    if mxu_dtype is None:
        mxu_dtype = x.dtype
    *lead, K = x.shape
    M = math.prod(lead) if lead else 1
    N = wq.shape[0]

    sub = 16 if (_is_bf16(x.dtype) or _is_bf16(mxu_dtype)) else 8
    tm = min(tm, _round_up(M, sub))
    tn = min(tn, _round_up(N, 128))
    tk = min(tk, _round_up(K, 128))
    Mp, Np, Kp = _round_up(M, tm), _round_up(N, tn), _round_up(K, tk)

    x2 = _pad2d(x.reshape(M, K), Mp, Kp)
    ws = [_pad2d(w, Np, Kp) for w in (wq, wk, wv)]
    bs = [_pad2d(b.reshape(1, N), 1, Np) for b in (bq, bk, bv)]

    kernel = functools.partial(_qkv_linear_kernel, mxu_dtype=mxu_dtype)
    x_spec = pl.BlockSpec((tm, tk), lambda i, j, k: (i, k))
    w_spec = pl.BlockSpec((tn, tk), lambda i, j, k: (j, k))
    b_spec = pl.BlockSpec((1, tn), lambda i, j, k: (0, j))
    o_spec = pl.BlockSpec((tm, tn), lambda i, j, k: (i, j))

    outs = pl.pallas_call(
        kernel,
        out_shape=[jax.ShapeDtypeStruct((Mp, Np), x.dtype) for _ in range(3)],
        grid_spec=pltpu.PrefetchScalarGridSpec(
            num_scalar_prefetch=0,
            grid=(Mp // tm, Np // tn, Kp // tk),
            in_specs=[x_spec, w_spec, w_spec, w_spec, b_spec, b_spec, b_spec],
            out_specs=[o_spec, o_spec, o_spec],
            scratch_shapes=[pltpu.VMEM((tm, tn), jnp.float32),
                            pltpu.VMEM((tm, tn), jnp.float32),
                            pltpu.VMEM((tm, tn), jnp.float32)],
        ),
        compiler_params=pltpu.CompilerParams(
            dimension_semantics=("parallel", "parallel", "arbitrary"),
            vmem_limit_bytes=_VMEM_LIMIT,
        ),
    )(x2, *ws, *bs)

    trimmed = []
    for o in outs:
        if Mp != M or Np != N:
            o = o[:M, :N]
        trimmed.append(o.reshape(*lead, N))
    return tuple(trimmed)


def pallas_flash_attention(q, k, v, heads, head_dim, *, mxu_dtype=None):
    """q, k, v: projected (B, S, E) slabs -> attention output (B, S, E).
    Flash-style: KV grid axis 'arbitrary' with m/l/acc scratch; no (S,S) score matrix."""
    B, S, E = q.shape
    if mxu_dtype is None:
        mxu_dtype = q.dtype
    scale = 1.0 / math.sqrt(head_dim)

    align = 16 if _is_bf16(q.dtype) else 8
    row_bytes = E * jnp.dtype(q.dtype).itemsize
    # Re-derive seq tiles from the VMEM budget (double-buffered q/k/v/o blocks + f32 acc),
    # so the same code fits v7x's 64 MiB/TC as well as v5e/v6e's 128 MiB.
    max_rows = max(align, ((_VMEM_LIMIT // 8) // row_bytes) // align * align)
    tq = _seq_tile(S, min(128, max_rows), align)
    tkv = _seq_tile(S, min(512, max_rows), align)   # keep KV tile large so P@V loads the MXU

    kernel = functools.partial(_flash_mha_kernel, heads=heads, head_dim=head_dim,
                               scale=scale, mxu_dtype=mxu_dtype)
    return pl.pallas_call(
        kernel,
        out_shape=jax.ShapeDtypeStruct((B, S, E), q.dtype),
        grid_spec=pltpu.PrefetchScalarGridSpec(
            num_scalar_prefetch=0,
            grid=(B, S // tq, S // tkv),
            in_specs=[
                pl.BlockSpec((1, tq, E), lambda b, qi, ki: (b, qi, 0)),
                pl.BlockSpec((1, tkv, E), lambda b, qi, ki: (b, ki, 0)),
                pl.BlockSpec((1, tkv, E), lambda b, qi, ki: (b, ki, 0)),
            ],
            out_specs=pl.BlockSpec((1, tq, E), lambda b, qi, ki: (b, qi, 0)),
            scratch_shapes=[
                pltpu.VMEM((heads, tq, 1), jnp.float32),   # running max  m
                pltpu.VMEM((heads, tq, 1), jnp.float32),   # running sum  l
                pltpu.VMEM((tq, E), jnp.float32),          # un-normalized output accumulator
            ],
        ),
        compiler_params=pltpu.CompilerParams(
            dimension_semantics=("parallel", "parallel", "arbitrary"),
            vmem_limit_bytes=_VMEM_LIMIT,
        ),
    )(q, k, v)


def multi_head_attention(params, Q, K, V, heads, mask=None, *, mxu_dtype=None):
    """Forward pass equivalent to MultiHeadAttention.forward(Q, K, V, mask=None)."""
    if mask is not None:
        # TODO(synk): optional attention-mask path (masked_fill(-1e9) before softmax) not implemented.
        raise NotImplementedError("mask is not supported by the Pallas kernels yet")
    E = Q.shape[-1]
    assert E % heads == 0, "embedding_dim must be divisible by heads"
    head_dim = E // heads

    if Q is K and K is V:
        # Self-attention: fused QKV projection reads the activation slab from HBM once.
        q, k, v = pallas_qkv_linear(Q, params["Wq_w"], params["Wq_b"],
                                    params["Wk_w"], params["Wk_b"],
                                    params["Wv_w"], params["Wv_b"],
                                    mxu_dtype=mxu_dtype)
    else:
        q = pallas_linear(Q, params["Wq_w"], params["Wq_b"], mxu_dtype=mxu_dtype)
        k = pallas_linear(K, params["Wk_w"], params["Wk_b"], mxu_dtype=mxu_dtype)
        v = pallas_linear(V, params["Wv_w"], params["Wv_b"], mxu_dtype=mxu_dtype)

    # Flash-style scaled dot-product attention with split_head/combine_heads fused in.
    attn = pallas_flash_attention(q, k, v, heads, head_dim, mxu_dtype=mxu_dtype)

    # Output projection.
    return pallas_linear(attn, params["Wo_w"], params["Wo_b"], mxu_dtype=mxu_dtype)


# -------------------------------------------------------------------- main ---

def _init_params(key, embedding_dim):
    """Deterministic synthetic parameter init (torch Linear shapes: W (out,in), b (out,))."""
    ks = jax.random.split(key, 8)
    bound = 1.0 / math.sqrt(embedding_dim)
    def w(k): return jax.random.uniform(k, (embedding_dim, embedding_dim),
                                        jnp.float32, -bound, bound)
    def b(k): return jax.random.uniform(k, (embedding_dim,),
                                        jnp.float32, -bound, bound)
    return {
        "Wq_w": w(ks[0]), "Wq_b": b(ks[1]),
        "Wk_w": w(ks[2]), "Wk_b": b(ks[3]),
        "Wv_w": w(ks[4]), "Wv_b": b(ks[5]),
        "Wo_w": w(ks[6]), "Wo_b": b(ks[7]),
    }


def _reference(params, Q, K, V, heads):
    """Pure-JAX reference mirroring the PyTorch forward."""
    B, S, E = Q.shape
    Dh = E // heads
    lin = lambda x, w, b: x @ w.T + b
    split = lambda x: x.reshape(B, S, heads, Dh).transpose(0, 2, 1, 3)
    q = split(lin(Q, params["Wq_w"], params["Wq_b"]))
    k = split(lin(K, params["Wk_w"], params["Wk_b"]))
    v = split(lin(V, params["Wv_w"], params["Wv_b"]))
    s = jnp.einsum("bhqd,bhkd->bhqk", q, k) / math.sqrt(Dh)
    p = jax.nn.softmax(s, axis=-1)
    o = jnp.einsum("bhqk,bhkd->bhqd", p, v)
    o = o.transpose(0, 2, 1, 3).reshape(B, S, E)
    return lin(o, params["Wo_w"], params["Wo_b"])


if __name__ == "__main__":
    heads = 4
    embedding_dim = 32
    batch, seq = 2, 8

    key = jax.random.PRNGKey(0)
    kp, kq, kk, kv = jax.random.split(key, 4)
    params = _init_params(kp, embedding_dim)

    Q = jax.random.normal(kq, (batch, seq, embedding_dim), jnp.float32)
    K = jax.random.normal(kk, (batch, seq, embedding_dim), jnp.float32)
    V = jax.random.normal(kv, (batch, seq, embedding_dim), jnp.float32)

    # 1) general (cross-attention) path, f32 MXU operands.
    out = jax.block_until_ready(multi_head_attention(params, Q, K, V, heads))
    ref = _reference(params, Q, K, V, heads)
    assert out.shape == (batch, seq, embedding_dim)
    assert jnp.allclose(out, ref, atol=1e-3, rtol=1e-3), "cross-attention mismatch vs reference"

    # 2) self-attention path -> exercises the fused QKV projection kernel.
    out_self = jax.block_until_ready(multi_head_attention(params, Q, Q, Q, heads))
    ref_self = _reference(params, Q, Q, Q, heads)
    assert jnp.allclose(out_self, ref_self, atol=1e-3, rtol=1e-3), "fused-QKV mismatch vs reference"

    # 3) bf16-MXU fast path (f32 accumulation, f32 softmax) -- tolerance loosened for bf16 rounding.
    out_bf16 = jax.block_until_ready(
        multi_head_attention(params, Q, K, V, heads, mxu_dtype=jnp.bfloat16))
    assert jnp.allclose(out_bf16, ref, atol=5e-2, rtol=5e-2), "bf16-MXU mismatch vs reference"

    print("KERNEL_OK")
</pallas_src>

<mosaic_0001>
module attributes {stable_mosaic.version = 11 : i64} {
  func.func @_linear_kernel(%arg0: i32, %arg1: i32, %arg2: i32, %arg3: memref<16x128xf32, #tpu.memory_space<vmem>>, %arg4: memref<128x128xf32, #tpu.memory_space<vmem>>, %arg5: memref<1x128xf32, #tpu.memory_space<vmem>>, %arg6: memref<16x128xf32, #tpu.memory_space<vmem>>, %arg7: memref<16x128xf32, #tpu.memory_space<vmem>>) attributes {dimension_semantics = [#tpu.dimension_semantics<parallel>, #tpu.dimension_semantics<parallel>, #tpu.dimension_semantics<arbitrary>], iteration_bounds = array<i64: 1, 1, 1>, scalar_prefetch = 0 : i64, scratch_operands = 1 : i64, tpu.core_type = #tpu.core_type<tc>, window_params = [{transform_indices = @transform_0, window_bounds = array<i64: 16, 128>}, {transform_indices = @transform_1, window_bounds = array<i64: 128, 128>}, {transform_indices = @transform_2, window_bounds = array<i64: 1, 128>}, {transform_indices = @transform_3, window_bounds = array<i64: 16, 128>}]} {
    %c0_i32 = arith.constant 0 : i32
    %0 = arith.cmpi eq, %arg2, %c0_i32 : i32
    %1 = arith.extui %0 : i1 to i32
    %c0_i32_0 = arith.constant 0 : i32
    %2 = arith.cmpi ne, %1, %c0_i32_0 : i32
    scf.if %2 {
      %cst_10 = arith.constant 0.000000e+00 : f32
      %12 = vector.broadcast %cst_10 : f32 to vector<16x128xf32>
      %c0_11 = arith.constant 0 : index
      %c0_12 = arith.constant 0 : index
      %13 = vector.load %arg7[%c0_11, %c0_12] : memref<16x128xf32, #tpu.memory_space<vmem>>, vector<16x128xf32>
      tpu.vector_store %arg7[%c0_11, %c0_12], %12 {strides = array<i32>} : memref<16x128xf32, #tpu.memory_space<vmem>>, vector<16x128xf32>,
    } else {
    }
    %c0 = arith.constant 0 : index
    %c0_1 = arith.constant 0 : index
    %3 = vector.load %arg7[%c0, %c0_1] : memref<16x128xf32, #tpu.memory_space<vmem>>, vector<16x128xf32>
    %c0_2 = arith.constant 0 : index
    %c0_3 = arith.constant 0 : index
    %4 = vector.load %arg3[%c0_2, %c0_3] : memref<16x128xf32, #tpu.memory_space<vmem>>, vector<16x128xf32>
    %c0_4 = arith.constant 0 : index
    %c0_5 = arith.constant 0 : index
    %5 = vector.load %arg4[%c0_4, %c0_5] : memref<128x128xf32, #tpu.memory_space<vmem>>, vector<128x128xf32>
    %cst = arith.constant dense<0.000000e+00> : vector<16x128xf32>
    %6 = tpu.matmul %4, %5, %cst {dimension_numbers = #tpu.dot_dimension_numbers<[1], [1], [0], [0], [0, 0, 1, 0], [], []>} : vector<16x128xf32>, vector<128x128xf32>, vector<16x128xf32> -> vector<16x128xf32>
    %7 = arith.addf %3, %6 : vector<16x128xf32>
    %c0_6 = arith.constant 0 : index
    %c0_7 = arith.constant 0 : index
    %8 = vector.load %arg7[%c0_6, %c0_7] : memref<16x128xf32, #tpu.memory_space<vmem>>, vector<16x128xf32>
    tpu.vector_store %arg7[%c0_6, %c0_7], %7 {strides = array<i32>} : memref<16x128xf32, #tpu.memory_space<vmem>>, vector<16x128xf32>,
    %c0_i32_8 = arith.constant 0 : i32
    %9 = arith.cmpi eq, %arg2, %c0_i32_8 : i32
    %10 = arith.extui %9 : i1 to i32
    %c0_i32_9 = arith.constant 0 : i32
    %11 = arith.cmpi ne, %10, %c0_i32_9 : i32
    scf.if %11 {
      %c0_10 = arith.constant 0 : index
      %c0_11 = arith.constant 0 : index
      %12 = vector.load %arg7[%c0_10, %c0_11] : memref<16x128xf32, #tpu.memory_space<vmem>>, vector<16x128xf32>
      %c0_12 = arith.constant 0 : index
      %c0_13 = arith.constant 0 : index
      %13 = vector.load %arg5[%c0_12, %c0_13] : memref<1x128xf32, #tpu.memory_space<vmem>>, vector<1x128xf32>
      %14 = vector.broadcast %13 : vector<1x128xf32> to vector<16x128xf32>
      %15 = arith.addf %12, %14 : vector<16x128xf32>
      %c0_14 = arith.constant 0 : index
      %c0_15 = arith.constant 0 : index
      %16 = vector.load %arg6[%c0_14, %c0_15] : memref<16x128xf32, #tpu.memory_space<vmem>>, vector<16x128xf32>
      tpu.vector_store %arg6[%c0_14, %c0_15], %15 {strides = array<i32>} : memref<16x128xf32, #tpu.memory_space<vmem>>, vector<16x128xf32>,
    } else {
    }
    return
  }
  func.func @transform_0(%arg0: i32, %arg1: i32, %arg2: i32) -> (i32, i32) {
    %c0_i32 = arith.constant 0 : i32
    return %arg0, %arg2 : i32, i32
  }
  func.func @transform_1(%arg0: i32, %arg1: i32, %arg2: i32) -> (i32, i32) {
    %c0_i32 = arith.constant 0 : i32
    return %arg1, %arg2 : i32, i32
  }
  func.func @transform_2(%arg0: i32, %arg1: i32, %arg2: i32) -> (i32, i32) {
    %c0_i32 = arith.constant 0 : i32
    %c0_i32_0 = arith.constant 0 : i32
    return %c0_i32, %arg1 : i32, i32
  }
  func.func @transform_3(%arg0: i32, %arg1: i32, %arg2: i32) -> (i32, i32) {
    %c0_i32 = arith.constant 0 : i32
    return %arg0, %arg1 : i32, i32
  }
}

</mosaic_0001>

<llo_original>
// kernel: tpu_custom_call.1
$region0: #{tpu_custom_call.1}
  #allocation0 [shape = 'u32[]', space=smem, size = 0x4, offset = 0x4, fixed_abs, tag = 'smem constant byte address 0x4 - core index']
  #allocation1 [shape = 'u32[144,128]{1,0:T(1,128)}', space=vmem, size = 0x12000, scoped, tag = 'internal scratch']
  #allocation2 [shape = 'f32[16,128]{1,0:T(8,128)}', space=vmem, size = 0x2000, scoped, tag = 'scratch operand']
  %s0 = inlined_call_operand.hbm [shape: f32[16,128], index: 0, kind: input, shape index: {}]
  %s1 = inlined_call_operand.hbm [shape: f32[128,128], index: 1, kind: input, shape index: {}]
  %s2 = inlined_call_operand.vmem [shape: f32[1,128], index: 2, kind: input, shape index: {}]
  %s3 = inlined_call_operand.hbm [shape: f32[16,128], index: 3, kind: output, shape index: {}]
  %s4 = sld [smem:[#allocation0]]
  $region38: #{tpu_custom_call.1} parent=0
    _
  %s6 = ssub.s32 1, %s4
  %s7 = scalar_select 0, %s6, %s4
  $region1: #{tpu_custom_call.1} parent=0
    #allocation3 [shape = 'u8[8192]{0}', space=vmem, size = 0x2000, scoped, tag = 'input window, operand 0, single buffered']
    #allocation4 [shape = 's32[1]{0}', space=sflag, size = 0x4, scoped, tag = 'scoped memory for tpu_custom_call.1']
    #allocation5 [shape = 's32[1]{0}', space=sflag, size = 0x4, scoped, tag = 'scoped memory for tpu_custom_call.1']
    #allocation6 [shape = 'u8[65536]{0}', space=vmem, size = 0x10000, scoped, tag = 'input window, operand 1, single buffered']
    #allocation7 [shape = 's32[1]{0}', space=sflag, size = 0x4, scoped, tag = 'scoped memory for tpu_custom_call.1']
    #allocation8 [shape = 'u8[8192]{0}', space=vmem, size = 0x2000, scoped, tag = 'output window, operand 0, single buffered']
    %8 = vsyncpa [#allocation4], 0
    %9 = vsyncpa [#allocation7], 0
    %10 = vsyncpa [#allocation5], 0
    // Predicated region
    $region2: #{tpu_custom_call.1} parent=1 // pred_check
      _
    $region3: #{tpu_custom_call.1} parent=1 // pred_check_branch
      %12 = sbr.rel (0) target = $region5
    $region4: #{tpu_custom_call.1} parent=1 // pred_region
      %s14 = ssub.s32 256, 256
      %15 = vsyncadd [#allocation4], %s14
      %s16 = sshll.u32 [#allocation3], 4
      %s17 = int_to_ptr.vmem [resolvable:$true] %s16
      %22 = dma.hbm_to_vmem [thread:$0]  %s0, 256, %s17, [#allocation4], 128, 128, 8
    $region5: #{tpu_custom_call.1} parent=1 // pred_fallthru
      _
    // Predicated region
    $region6: #{tpu_custom_call.1} parent=1 // pred_check
      _
    $region7: #{tpu_custom_call.1} parent=1 // pred_check_branch
      %24 = sbr.rel (0) target = $region9
    $region8: #{tpu_custom_call.1} parent=1 // pred_region
      %s26 = ssub.s32 2048, 2048
      %27 = vsyncadd [#allocation7], %s26
      %s28 = sshll.u32 [#allocation6], 4
      %s29 = int_to_ptr.vmem [resolvable:$true] %s28
      %34 = dma.hbm_to_vmem [thread:$0]  %s1, 2048, %s29, [#allocation7], 128, 128, 8
    $region9: #{tpu_custom_call.1} parent=1 // pred_fallthru
      _
    // Predicated region
    $region10: #{tpu_custom_call.1} parent=1 // pred_check
      _
    $region11: #{tpu_custom_call.1} parent=1 // pred_check_branch
      %36 = sbr.rel (0) target = $region13
    $region12: #{tpu_custom_call.1} parent=1 // pred_region
      _
    $region13: #{tpu_custom_call.1} parent=1 // pred_fallthru
      _
    // Predicated region
    $region14: #{tpu_custom_call.1} parent=1 // pred_check
      _
    $region15: #{tpu_custom_call.1} parent=1 // pred_check_branch
      %38 = sbr.rel (0) target = $region17
    $region16: #{tpu_custom_call.1} parent=1 // pred_region
      %39 = dma.done [#allocation4], 256
    $region17: #{tpu_custom_call.1} parent=1 // pred_fallthru
      _
    // Predicated region
    $region18: #{tpu_custom_call.1} parent=1 // pred_check
      _
    $region19: #{tpu_custom_call.1} parent=1 // pred_check_branch
      %41 = sbr.rel (0) target = $region21
    $region20: #{tpu_custom_call.1} parent=1 // pred_region
      %42 = dma.done [#allocation7], 2048
    $region21: #{tpu_custom_call.1} parent=1 // pred_fallthru
      _
    %p43 = scmp.eq.s32.totalorder 0, 0
    // Predicated region
    $region22: #{tpu_custom_call.1} parent=1 // pred_check
      %p44 = pneg %p43
    $region23: #{tpu_custom_call.1} parent=1 // pred_check_branch
      %46 = sbr.rel (%p44) target = $region25
    $region24: #{tpu_custom_call.1} parent=1 // pred_region
      %47 = vst [vmem:[#allocation2] sm:$0xff] 0.0
      %48 = vst [vmem:[#allocation2 + $0x8] sm:$0xff] 0.0
    $region25: #{tpu_custom_call.1} parent=1 // pred_fallthru
      _
    %v49 = vld [vmem:[#allocation2] sm:$0xff]
    %v50 = vld [vmem:[#allocation2 + $0x8] sm:$0xff]
    %v51 = vld [vmem:[#allocation3] sm:$0xff]
    %v52 = vld [vmem:[#allocation3 + $0x8] sm:$0xff]
    %v53 = vld [vmem:[#allocation6] sm:$0xff]
    %v54 = vld [vmem:[#allocation6 + $0x8] sm:$0xff]
    %v55 = vld [vmem:[#allocation6 + $0x10] sm:$0xff]
    %v56 = vld [vmem:[#allocation6 + $0x18] sm:$0xff]
    %v57 = vld [vmem:[#allocation6 + $0x20] sm:$0xff]
    %v58 = vld [vmem:[#allocation6 + $0x28] sm:$0xff]
    %v59 = vld [vmem:[#allocation6 + $0x30] sm:$0xff]
    %v60 = vld [vmem:[#allocation6 + $0x38] sm:$0xff]
    %v61 = vld [vmem:[#allocation6 + $0x40] sm:$0xff]
    %v62 = vld [vmem:[#allocation6 + $0x48] sm:$0xff]
    %v63 = vld [vmem:[#allocation6 + $0x50] sm:$0xff]
    %v64 = vld [vmem:[#allocation6 + $0x58] sm:$0xff]
    %v65 = vld [vmem:[#allocation6 + $0x60] sm:$0xff]
    %v66 = vld [vmem:[#allocation6 + $0x68] sm:$0xff]
    %v67 = vld [vmem:[#allocation6 + $0x70] sm:$0xff]
    %v68 = vld [vmem:[#allocation6 + $0x78] sm:$0xff]
    %69 = vmatprep.subr.mxu0 0.0
    %70 = vmatpush1.xpose.msra.mxu0 %v68
    %71 = vmatprep.subr.mxu0 0.0
    %72 = vmatpush1.xpose.msra.mxu0 %v67
    %73 = vmatprep.subr.mxu0 0.0
    %74 = vmatpush1.xpose.msra.mxu0 %v66
    %75 = vmatprep.subr.mxu0 0.0
    %76 = vmatpush1.xpose.msra.mxu0 %v65
    %77 = vmatprep.subr.mxu0 0.0
    %78 = vmatpush1.xpose.msra.mxu0 %v64
    %79 = vmatprep.subr.mxu0 0.0
    %80 = vmatpush1.xpose.msra.mxu0 %v63
    %81 = vmatprep.subr.mxu0 0.0
    %82 = vmatpush1.xpose.msra.mxu0 %v62
    %83 = vmatprep.subr.mxu0 0.0
    %84 = vmatpush1.xpose.msra.mxu0 %v61
    %85 = vmatprep.subr.mxu0 0.0
    %86 = vmatpush1.xpose.msra.mxu0 %v60
    %87 = vmatprep.subr.mxu0 0.0
    %88 = vmatpush1.xpose.msra.mxu0 %v59
    %89 = vmatprep.subr.mxu0 0.0
    %90 = vmatpush1.xpose.msra.mxu0 %v58
    %91 = vmatprep.subr.mxu0 0.0
    %92 = vmatpush1.xpose.msra.mxu0 %v57
    %93 = vmatprep.subr.mxu0 0.0
    %94 = vmatpush1.xpose.msra.mxu0 %v56
    %95 = vmatprep.subr.mxu0 0.0
    %96 = vmatpush1.xpose.msra.mxu0 %v55
    %97 = vmatprep.subr.mxu0 0.0
    %98 = vmatpush1.xpose.msra.mxu0 %v54
    %99 = vmatprep.subr.mxu0 0.0
    %100 = vmatpush1.xpose.msra.mxu0 %v53
    %101 = vmatprep.subr.mxu0 0.0
    %102 = vmatpush2.xpose.msra.mxu0 0.0
    %103 = vmatprep.subr.mxu0 0.0
    %104 = vmatpush2.xpose.msra.mxu0 0.0
    %105 = vmatprep.subr.mxu0 0.0
    %106 = vmatpush2.xpose.msra.mxu0 0.0
    %107 = vmatprep.subr.mxu0 0.0
    %108 = vmatpush2.xpose.msra.mxu0 0.0
    %109 = vmatprep.subr.mxu0 0.0
    %110 = vmatpush2.xpose.msra.mxu0 0.0
    %111 = vmatprep.subr.mxu0 0.0
    %112 = vmatpush2.xpose.msra.mxu0 0.0
    %113 = vmatprep.subr.mxu0 0.0
    %114 = vmatpush2.xpose.msra.mxu0 0.0
    %115 = vmatprep.subr.mxu0 0.0
    %116 = vmatpush2.xpose.msra.mxu0 0.0
    %117 = vmatprep.subr.mxu0 0.0
    %118 = vmatpush2.xpose.msra.mxu0 0.0
    %119 = vmatprep.subr.mxu0 0.0
    %120 = vmatpush2.xpose.msra.mxu0 0.0
    %121 = vmatprep.subr.mxu0 0.0
    %122 = vmatpush2.xpose.msra.mxu0 0.0
    %123 = vmatprep.subr.mxu0 0.0
    %124 = vmatpush2.xpose.msra.mxu0 0.0
    %125 = vmatprep.subr.mxu0 0.0
    %126 = vmatpush2.xpose.msra.mxu0 0.0
    %127 = vmatprep.subr.mxu0 0.0
    %128 = vmatpush2.xpose.msra.mxu0 0.0
    %129 = vmatprep.subr.mxu0 0.0
    %130 = vmatpush2.xpose.msra.mxu0 0.0
    %131 = vmatprep.subr.mxu0 0.0
    %132 = vmatpush2.xpose.msra.mxu0 0.0
    %133 = vmatprep.mubr.f32.mxu0 0.0
    %134 = vmatmul.mubr.f32.gmra.mxu0 %v51
    %v135 = vpop.f32.mrf.mxu0
    %v136 = vadd.f32 0.0, %v135
    %v137 = vpop.f32.mrf.mxu0
    %138 = vmatprep.mubr.f32.mxu0 0.0
    %139 = vmatmul.mubr.f32.gmra.mxu0 %v52
    %v140 = vpop.f32.mrf.mxu0
    %v141 = vadd.f32 0.0, %v140
    %v142 = vpop.f32.mrf.mxu0
    %143 = vdwg.mxu0
    %v144 = vadd.f32 %v49, %v136
    %v145 = vadd.f32 %v50, %v141
    %146 = vst [vmem:[#allocation2] sm:$0xff] %v144
    %147 = vst [vmem:[#allocation2 + $0x8] sm:$0xff] %v145
    // Predicated region
    $region26: #{tpu_custom_call.1} parent=1 // pred_check
      %p148 = pneg %p43
    $region27: #{tpu_custom_call.1} parent=1 // pred_check_branch
      %150 = sbr.rel (%p148) target = $region29
    $region28: #{tpu_custom_call.1} parent=1 // pred_region
      %v151 = vld [vmem:[#allocation2] sm:$0xff]
      %v152 = vld [vmem:[#allocation2 + $0x8] sm:$0xff]
      %v153 = vld [vmem:[%s2] sm:$0x1]
      %v155 = vlaneseq
      %v156 = vshrl.u32 %v155, 7
      %v157 = vsub.s32 0, %v156
      %v158 = vrot.slane %v153, %v157
      %v160 = vadd.f32 %v151, %v158
      %v161 = vadd.f32 %v152, %v158
      %162 = vst [vmem:[#allocation8] sm:$0xff] %v160
      %163 = vst [vmem:[#allocation8 + $0x8] sm:$0xff] %v161
    $region29: #{tpu_custom_call.1} parent=1 // pred_fallthru
      _
    // Predicated region
    $region30: #{tpu_custom_call.1} parent=1 // pred_check
      _
    $region31: #{tpu_custom_call.1} parent=1 // pred_check_branch
      %165 = sbr.rel (0) target = $region33
    $region32: #{tpu_custom_call.1} parent=1 // pred_region
      %s167 = ssub.s32 256, 256
      %168 = vsyncadd [#allocation5], %s167
      %s169 = sshll.u32 [#allocation8], 4
      %s170 = int_to_ptr.vmem [resolvable:$true] %s169
      %175 = dma.vmem_to_hbm [thread:$0]  %s170, 256, %s3, [#allocation5], 128, 128, 8
    $region33: #{tpu_custom_call.1} parent=1 // pred_fallthru
      _
    // Predicated region
    $region34: #{tpu_custom_call.1} parent=1 // pred_check
      _
    $region35: #{tpu_custom_call.1} parent=1 // pred_check_branch
      %177 = sbr.rel (0) target = $region37
    $region36: #{tpu_custom_call.1} parent=1 // pred_region
      %178 = dma.done [#allocation5], 256
    $region37: #{tpu_custom_call.1} parent=1 // pred_fallthru
      _
    %179 = vsyncpa [#allocation4], 1
    %180 = vsyncpa [#allocation7], 1
    %181 = vsyncpa [#allocation5], 1

</llo_original>
